<compile_context>
chip_gen: v6e
topology: v6e:2x2x1
jax: 0.10.0
libtpu: 0.0.40
codegen_flags: <defaults>
</compile_context>

<pallas_src>
import jax
import jax.numpy as jnp
from jax.experimental import pallas as pl
from jax.experimental.pallas import tpu as pltpu

INPUT_SIZE = 10
HIDDEN_SIZE = 20
OUTPUT_SIZE = 5

LANE = 128          # pad the (VMEM-resident) hidden dim to this
SUBLANE = 8         # sublane granularity for the batch (M) tile
MAX_BLOCK_M = 2048  # batch rows per grid step for large batches


def _round_up(n, m):
    return ((n + m - 1) // m) * m


def _ffn_kernel(x_ref, w1_ref, b1_ref, w2_ref, b2_ref, o_ref):
    # x_ref:  (TM, IN)        unpadded activation tile
    # w1_ref: (IN, HID_P)     pre-transposed fc1 weight, hidden padded to 128
    # b1_ref: (1, HID_P)
    # w2_ref: (HID_P, OUT)    pre-transposed fc2 weight
    # b2_ref: (1, OUT)
    # o_ref:  (TM, OUT)       unpadded output tile
    x = x_ref[...]

    # fc1 + bias + ReLU (MXU matmul, f32 accumulate).  Padded hidden columns
    # have zero weight and zero bias -> relu(0) = 0 -> exact.
    h = jnp.dot(x, w1_ref[...], preferred_element_type=jnp.float32)
    h = jnp.maximum(h + b1_ref[...], 0.0)

    # fc2 + bias.
    out = jnp.dot(h, w2_ref[...], preferred_element_type=jnp.float32)
    o_ref[...] = (out + b2_ref[...]).astype(o_ref.dtype)


def prepare_params(w1, b1, w2, b2):
    """One-time preprocessing of PyTorch-layout Linear params.

    w1: (hidden, in)  b1: (hidden,)   w2: (out, hidden)  b2: (out,)
    Returns weights transposed to (in, hidden_p) / (hidden_p, out) with the
    hidden dim zero-padded to a lane multiple, and biases as (1, dim) rows.
    """
    hid, in_f = w1.shape
    out_f = w2.shape[0]
    hid_p = _round_up(hid, LANE)

    w1t = jnp.zeros((in_f, hid_p), w1.dtype).at[:, :hid].set(w1.T)
    b1r = jnp.zeros((1, hid_p), b1.dtype).at[0, :hid].set(b1)
    w2t = jnp.zeros((hid_p, out_f), w2.dtype).at[:hid, :].set(w2.T)
    b2r = b2.reshape(1, out_f)
    return w1t, b1r, w2t, b2r


def feedforward_nn(x, params, *, block_m=MAX_BLOCK_M):
    """2-layer MLP forward pass as a single gridded Pallas kernel.

    x:      (batch, in_features), unpadded.
    params: output of prepare_params.
    Returns (batch, out_features).
    """
    w1t, b1r, w2t, b2r = params
    batch, in_f = x.shape
    in_w, hid_p = w1t.shape
    out_f = w2t.shape[1]
    assert in_w == in_f

    # Batch tiling: cap tile size at block_m; keep >=2 grid steps when the
    # batch is large enough so both v7x TensorCores get work (free elsewhere).
    steps = max(1, pl.cdiv(batch, block_m))
    if steps == 1 and batch >= 2 * SUBLANE:
        steps = 2
    if steps == 1:
        tm = batch  # full-extent block: legal for any batch, zero padding
    else:
        tm = _round_up(pl.cdiv(batch, steps), SUBLANE)

    grid = (pl.cdiv(batch, tm),)

    return pl.pallas_call(
        _ffn_kernel,
        out_shape=jax.ShapeDtypeStruct((batch, out_f), x.dtype),
        grid_spec=pltpu.PrefetchScalarGridSpec(
            num_scalar_prefetch=0,
            grid=grid,
            in_specs=[
                # Activations: tiled over batch, pipelined by Pallas.
                pl.BlockSpec((tm, in_f), lambda i: (i, 0)),
                # Weights/biases: constant index_map -> resident across steps.
                pl.BlockSpec((in_f, hid_p), lambda i: (0, 0)),
                pl.BlockSpec((1, hid_p), lambda i: (0, 0)),
                pl.BlockSpec((hid_p, out_f), lambda i: (0, 0)),
                pl.BlockSpec((1, out_f), lambda i: (0, 0)),
            ],
            out_specs=pl.BlockSpec((tm, out_f), lambda i: (i, 0)),
        ),
        compiler_params=pltpu.CompilerParams(
            dimension_semantics=("parallel",),
        ),
    )(x, w1t, b1r, w2t, b2r)


def _init_params(key):
    """Deterministic parameter init (PyTorch-like uniform fan-in bounds)."""
    k1, k2, k3, k4 = jax.random.split(key, 4)
    bound1 = 1.0 / jnp.sqrt(INPUT_SIZE)
    bound2 = 1.0 / jnp.sqrt(HIDDEN_SIZE)
    w1 = jax.random.uniform(k1, (HIDDEN_SIZE, INPUT_SIZE), jnp.float32,
                            -bound1, bound1)
    b1 = jax.random.uniform(k2, (HIDDEN_SIZE,), jnp.float32, -bound1, bound1)
    w2 = jax.random.uniform(k3, (OUTPUT_SIZE, HIDDEN_SIZE), jnp.float32,
                            -bound2, bound2)
    b2 = jax.random.uniform(k4, (OUTPUT_SIZE,), jnp.float32, -bound2, bound2)
    return w1, b1, w2, b2


def _reference(x, w1, b1, w2, b2):
    return jnp.maximum(x @ w1.T + b1, 0.0) @ w2.T + b2


if __name__ == "__main__":
    key = jax.random.PRNGKey(0)
    k_params, k_x1, k_x2 = jax.random.split(key, 3)
    w1, b1, w2, b2 = _init_params(k_params)
    params = prepare_params(w1, b1, w2, b2)   # one-time preprocessing

    # Primary small-shape run (batch=8, matching the module's feature sizes).
    batch = 8
    x = jax.random.normal(k_x1, (batch, INPUT_SIZE), jnp.float32)
    out = jax.block_until_ready(feedforward_nn(x, params))
    ref = _reference(x, w1, b1, w2, b2)
    assert out.shape == (batch, OUTPUT_SIZE)
    assert jnp.allclose(out, ref, atol=1e-5, rtol=1e-5)

    # Secondary check exercising the multi-step batch grid + partial last
    # block (batch not a multiple of the tile size).
    batch2 = 300
    x2 = jax.random.normal(k_x2, (batch2, INPUT_SIZE), jnp.float32)
    out2 = jax.block_until_ready(feedforward_nn(x2, params))
    ref2 = _reference(x2, w1, b1, w2, b2)
    assert out2.shape == (batch2, OUTPUT_SIZE)
    assert jnp.allclose(out2, ref2, atol=1e-5, rtol=1e-5)

    print("KERNEL_OK")
</pallas_src>

<mosaic_0001>
module attributes {stable_mosaic.version = 11 : i64} {
  func.func @_ffn_kernel(%arg0: i32, %arg1: memref<8x10xf32, #tpu.memory_space<vmem>>, %arg2: memref<10x128xf32, #tpu.memory_space<vmem>>, %arg3: memref<1x128xf32, #tpu.memory_space<vmem>>, %arg4: memref<128x5xf32, #tpu.memory_space<vmem>>, %arg5: memref<1x5xf32, #tpu.memory_space<vmem>>, %arg6: memref<8x5xf32, #tpu.memory_space<vmem>>) attributes {dimension_semantics = [#tpu.dimension_semantics<parallel>], iteration_bounds = array<i64: 1>, scalar_prefetch = 0 : i64, scratch_operands = 0 : i64, tpu.core_type = #tpu.core_type<tc>, window_params = [{transform_indices = @transform_0, window_bounds = array<i64: 8, 10>}, {pipeline_mode = #tpu.pipeline_mode<synchronous>, transform_indices = @transform_1, window_bounds = array<i64: 10, 128>}, {pipeline_mode = #tpu.pipeline_mode<synchronous>, transform_indices = @transform_2, window_bounds = array<i64: 1, 128>}, {pipeline_mode = #tpu.pipeline_mode<synchronous>, transform_indices = @transform_3, window_bounds = array<i64: 128, 5>}, {pipeline_mode = #tpu.pipeline_mode<synchronous>, transform_indices = @transform_4, window_bounds = array<i64: 1, 5>}, {transform_indices = @transform_5, window_bounds = array<i64: 8, 5>}]} {
    %c0 = arith.constant 0 : index
    %c0_0 = arith.constant 0 : index
    %0 = vector.load %arg1[%c0, %c0_0] : memref<8x10xf32, #tpu.memory_space<vmem>>, vector<8x10xf32>
    %c0_1 = arith.constant 0 : index
    %c0_2 = arith.constant 0 : index
    %1 = vector.load %arg2[%c0_1, %c0_2] : memref<10x128xf32, #tpu.memory_space<vmem>>, vector<10x128xf32>
    %cst = arith.constant dense<0.000000e+00> : vector<8x128xf32>
    %2 = tpu.matmul %0, %1, %cst {dimension_numbers = #tpu.dot_dimension_numbers<[1], [0], [0], [1], [0, 0, 1, 1], [], []>} : vector<8x10xf32>, vector<10x128xf32>, vector<8x128xf32> -> vector<8x128xf32>
    %c0_3 = arith.constant 0 : index
    %c0_4 = arith.constant 0 : index
    %3 = vector.load %arg3[%c0_3, %c0_4] : memref<1x128xf32, #tpu.memory_space<vmem>>, vector<1x128xf32>
    %4 = vector.broadcast %3 : vector<1x128xf32> to vector<8x128xf32>
    %5 = arith.addf %2, %4 : vector<8x128xf32>
    %cst_5 = arith.constant 0.000000e+00 : f32
    %6 = vector.broadcast %cst_5 : f32 to vector<8x128xf32>
    %7 = arith.maximumf %5, %6 : vector<8x128xf32>
    %c0_6 = arith.constant 0 : index
    %c0_7 = arith.constant 0 : index
    %8 = vector.load %arg4[%c0_6, %c0_7] : memref<128x5xf32, #tpu.memory_space<vmem>>, vector<128x5xf32>
    %cst_8 = arith.constant dense<0.000000e+00> : vector<8x5xf32>
    %9 = tpu.matmul %7, %8, %cst_8 {dimension_numbers = #tpu.dot_dimension_numbers<[1], [0], [0], [1], [0, 0, 1, 1], [], []>} : vector<8x128xf32>, vector<128x5xf32>, vector<8x5xf32> -> vector<8x5xf32>
    %c0_9 = arith.constant 0 : index
    %c0_10 = arith.constant 0 : index
    %10 = vector.load %arg5[%c0_9, %c0_10] : memref<1x5xf32, #tpu.memory_space<vmem>>, vector<1x5xf32>
    %11 = vector.broadcast %10 : vector<1x5xf32> to vector<8x5xf32>
    %12 = arith.addf %9, %11 : vector<8x5xf32>
    %c0_11 = arith.constant 0 : index
    %c0_12 = arith.constant 0 : index
    %13 = vector.load %arg6[%c0_11, %c0_12] : memref<8x5xf32, #tpu.memory_space<vmem>>, vector<8x5xf32>
    tpu.vector_store %arg6[%c0_11, %c0_12], %12 {strides = array<i32>} : memref<8x5xf32, #tpu.memory_space<vmem>>, vector<8x5xf32>,
    return
  }
  func.func @transform_0(%arg0: i32) -> (i32, i32) {
    %c0_i32 = arith.constant 0 : i32
    %c0_i32_0 = arith.constant 0 : i32
    return %arg0, %c0_i32 : i32, i32
  }
  func.func @transform_1(%arg0: i32) -> (i32, i32) {
    %c0_i32 = arith.constant 0 : i32
    %c0_i32_0 = arith.constant 0 : i32
    %c0_i32_1 = arith.constant 0 : i32
    return %c0_i32, %c0_i32_0 : i32, i32
  }
  func.func @transform_2(%arg0: i32) -> (i32, i32) {
    %c0_i32 = arith.constant 0 : i32
    %c0_i32_0 = arith.constant 0 : i32
    %c0_i32_1 = arith.constant 0 : i32
    return %c0_i32, %c0_i32_0 : i32, i32
  }
  func.func @transform_3(%arg0: i32) -> (i32, i32) {
    %c0_i32 = arith.constant 0 : i32
    %c0_i32_0 = arith.constant 0 : i32
    %c0_i32_1 = arith.constant 0 : i32
    return %c0_i32, %c0_i32_0 : i32, i32
  }
  func.func @transform_4(%arg0: i32) -> (i32, i32) {
    %c0_i32 = arith.constant 0 : i32
    %c0_i32_0 = arith.constant 0 : i32
    %c0_i32_1 = arith.constant 0 : i32
    return %c0_i32, %c0_i32_0 : i32, i32
  }
  func.func @transform_5(%arg0: i32) -> (i32, i32) {
    %c0_i32 = arith.constant 0 : i32
    %c0_i32_0 = arith.constant 0 : i32
    return %arg0, %c0_i32 : i32, i32
  }
}

</mosaic_0001>

<llo_original>
// kernel: tpu_custom_call.1
$region0: #{tpu_custom_call.1}
  #allocation0 [shape = 'u32[]', space=smem, size = 0x4, offset = 0x4, fixed_abs, tag = 'smem constant byte address 0x4 - core index']
  #allocation1 [shape = 'u32[144,128]{1,0:T(1,128)}', space=vmem, size = 0x12000, scoped, tag = 'internal scratch']
  %s0 = inlined_call_operand.vmem [shape: f32[8,10], index: 0, kind: input, shape index: {}]
  %s1 = inlined_call_operand.vmem [shape: f32[10,128], index: 1, kind: input, shape index: {}]
  %s2 = inlined_call_operand.vmem [shape: f32[1,128], index: 2, kind: input, shape index: {}]
  %s3 = inlined_call_operand.vmem [shape: f32[128,5], index: 3, kind: input, shape index: {}]
  %s4 = inlined_call_operand.vmem [shape: f32[1,5], index: 4, kind: input, shape index: {}]
  %s5 = inlined_call_operand.hbm [shape: f32[8,5], index: 5, kind: output, shape index: {}]
  %s6 = sld [smem:[#allocation0]]
  $region30: #{tpu_custom_call.1} parent=0
    _
  %s8 = ssub.s32 1, %s6
  %s9 = scalar_select 0, %s8, %s6
  $region1: #{tpu_custom_call.1} parent=0
    #allocation2 [shape = 'u8[4096]{0}', space=vmem, size = 0x1000, scoped, tag = 'output window, operand 0, single buffered']
    #allocation3 [shape = 's32[1]{0}', space=sflag, size = 0x4, scoped, tag = 'scoped memory for tpu_custom_call.1']
    %10 = vsyncpa [#allocation3], 0
    // Predicated region
    $region2: #{tpu_custom_call.1} parent=1 // pred_check
      _
    $region3: #{tpu_custom_call.1} parent=1 // pred_check_branch
      %12 = sbr.rel (0) target = $region5
    $region4: #{tpu_custom_call.1} parent=1 // pred_region
      _
    $region5: #{tpu_custom_call.1} parent=1 // pred_fallthru
      _
    // Predicated region
    $region6: #{tpu_custom_call.1} parent=1 // pred_check
      _
    $region7: #{tpu_custom_call.1} parent=1 // pred_check_branch
      %14 = sbr.rel (0) target = $region9
    $region8: #{tpu_custom_call.1} parent=1 // pred_region
      _
    $region9: #{tpu_custom_call.1} parent=1 // pred_fallthru
      _
    // Predicated region
    $region10: #{tpu_custom_call.1} parent=1 // pred_check
      _
    $region11: #{tpu_custom_call.1} parent=1 // pred_check_branch
      %16 = sbr.rel (0) target = $region13
    $region12: #{tpu_custom_call.1} parent=1 // pred_region
      _
    $region13: #{tpu_custom_call.1} parent=1 // pred_fallthru
      _
    // Predicated region
    $region14: #{tpu_custom_call.1} parent=1 // pred_check
      _
    $region15: #{tpu_custom_call.1} parent=1 // pred_check_branch
      %18 = sbr.rel (0) target = $region17
    $region16: #{tpu_custom_call.1} parent=1 // pred_region
      _
    $region17: #{tpu_custom_call.1} parent=1 // pred_fallthru
      _
    // Predicated region
    $region18: #{tpu_custom_call.1} parent=1 // pred_check
      _
    $region19: #{tpu_custom_call.1} parent=1 // pred_check_branch
      %20 = sbr.rel (0) target = $region21
    $region20: #{tpu_custom_call.1} parent=1 // pred_region
      _
    $region21: #{tpu_custom_call.1} parent=1 // pred_fallthru
      _
    %v21 = vld [vmem:[%s0] sm:$0xff]
    %v22 = vld [vmem:[%s1] sm:$0xff]
    %v23 = vld [vmem:[%s1 + $0x8] sm:$0x3]
    %v24 = vld [vmem:[%s2] sm:$0x1]
    %v26 = vlaneseq
    %v27 = vshrl.u32 %v26, 7
    %v28 = vsub.s32 0, %v27
    %v29 = vrot.slane %v24, %v28
    %vm31 = vcmask 80896
    %v33 = vsel %vm31, %v21, 0
    %vm35 = vcmask 1041408
    %v37 = vsel %vm35, %v23, 0
    %39 = vmatprep.subr.mxu0 0.0
    %40 = vmatpush1.msra.mxu0 0.0
    %41 = vmatprep.subr.mxu0 0.0
    %42 = vmatpush1.msra.mxu0 0.0
    %43 = vmatprep.subr.mxu0 0.0
    %44 = vmatpush1.msra.mxu0 0.0
    %45 = vmatprep.subr.mxu0 0.0
    %46 = vmatpush1.msra.mxu0 0.0
    %47 = vmatprep.subr.mxu0 0.0
    %48 = vmatpush1.msra.mxu0 0.0
    %49 = vmatprep.subr.mxu0 0.0
    %50 = vmatpush1.msra.mxu0 0.0
    %51 = vmatprep.subr.mxu0 0.0
    %52 = vmatpush1.msra.mxu0 0.0
    %53 = vmatprep.subr.mxu0 0.0
    %54 = vmatpush1.msra.mxu0 0.0
    %55 = vmatprep.subr.mxu0 0.0
    %56 = vmatpush1.msra.mxu0 0.0
    %57 = vmatprep.subr.mxu0 0.0
    %58 = vmatpush1.msra.mxu0 0.0
    %59 = vmatprep.subr.mxu0 0.0
    %60 = vmatpush1.msra.mxu0 0.0
    %61 = vmatprep.subr.mxu0 0.0
    %62 = vmatpush1.msra.mxu0 0.0
    %63 = vmatprep.subr.mxu0 0.0
    %64 = vmatpush1.msra.mxu0 0.0
    %65 = vmatprep.subr.mxu0 0.0
    %66 = vmatpush1.msra.mxu0 0.0
    %67 = vmatprep.subr.mxu0 0.0
    %68 = vmatpush1.msra.mxu0 %v37
    %69 = vmatprep.subr.mxu0 0.0
    %70 = vmatpush1.msra.mxu0 %v22
    %71 = vmatprep.subr.mxu0 0.0
    %72 = vmatpush2.msra.mxu0 0.0
    %73 = vmatprep.subr.mxu0 0.0
    %74 = vmatpush2.msra.mxu0 0.0
    %75 = vmatprep.subr.mxu0 0.0
    %76 = vmatpush2.msra.mxu0 0.0
    %77 = vmatprep.subr.mxu0 0.0
    %78 = vmatpush2.msra.mxu0 0.0
    %79 = vmatprep.subr.mxu0 0.0
    %80 = vmatpush2.msra.mxu0 0.0
    %81 = vmatprep.subr.mxu0 0.0
    %82 = vmatpush2.msra.mxu0 0.0
    %83 = vmatprep.subr.mxu0 0.0
    %84 = vmatpush2.msra.mxu0 0.0
    %85 = vmatprep.subr.mxu0 0.0
    %86 = vmatpush2.msra.mxu0 0.0
    %87 = vmatprep.subr.mxu0 0.0
    %88 = vmatpush2.msra.mxu0 0.0
    %89 = vmatprep.subr.mxu0 0.0
    %90 = vmatpush2.msra.mxu0 0.0
    %91 = vmatprep.subr.mxu0 0.0
    %92 = vmatpush2.msra.mxu0 0.0
    %93 = vmatprep.subr.mxu0 0.0
    %94 = vmatpush2.msra.mxu0 0.0
    %95 = vmatprep.subr.mxu0 0.0
    %96 = vmatpush2.msra.mxu0 0.0
    %97 = vmatprep.subr.mxu0 0.0
    %98 = vmatpush2.msra.mxu0 0.0
    %99 = vmatprep.subr.mxu0 0.0
    %100 = vmatpush2.msra.mxu0 0.0
    %101 = vmatprep.subr.mxu0 0.0
    %102 = vmatpush2.msra.mxu0 0.0
    %103 = vmatprep.mubr.f32.mxu0 0.0
    %104 = vmatmul.mubr.f32.gmra.mxu0 %v33
    %v105 = vpop.f32.mrf.mxu0
    %v106 = vadd.f32 %v29, %v105
    %v107 = vpop.f32.mrf.mxu0
    %108 = vdwg.mxu0
    %v109 = vmax.f32 %v106, 0.0
    %v110 = vld [vmem:[%s3] sm:$0xff]
    %v111 = vld [vmem:[%s3 + $0x8] sm:$0xff]
    %v112 = vld [vmem:[%s3 + $0x10] sm:$0xff]
    %v113 = vld [vmem:[%s3 + $0x18] sm:$0xff]
    %v114 = vld [vmem:[%s3 + $0x20] sm:$0xff]
    %v115 = vld [vmem:[%s3 + $0x28] sm:$0xff]
    %v116 = vld [vmem:[%s3 + $0x30] sm:$0xff]
    %v117 = vld [vmem:[%s3 + $0x38] sm:$0xff]
    %v118 = vld [vmem:[%s3 + $0x40] sm:$0xff]
    %v119 = vld [vmem:[%s3 + $0x48] sm:$0xff]
    %v120 = vld [vmem:[%s3 + $0x50] sm:$0xff]
    %v121 = vld [vmem:[%s3 + $0x58] sm:$0xff]
    %v122 = vld [vmem:[%s3 + $0x60] sm:$0xff]
    %v123 = vld [vmem:[%s3 + $0x68] sm:$0xff]
    %v124 = vld [vmem:[%s3 + $0x70] sm:$0xff]
    %v125 = vld [vmem:[%s3 + $0x78] sm:$0xff]
    %v126 = vld [vmem:[%s4] sm:$0x1]
    %v128 = vlaneseq
    %v129 = vshrl.u32 %v128, 7
    %v130 = vsub.s32 0, %v129
    %v131 = vrot.slane %v126, %v130
    %133 = vmatprep.subr.mxu0 0.0
    %134 = vmatpush1.msra.mxu0 %v125
    %135 = vmatprep.subr.mxu0 0.0
    %136 = vmatpush1.msra.mxu0 %v124
    %137 = vmatprep.subr.mxu0 0.0
    %138 = vmatpush1.msra.mxu0 %v123
    %139 = vmatprep.subr.mxu0 0.0
    %140 = vmatpush1.msra.mxu0 %v122
    %141 = vmatprep.subr.mxu0 0.0
    %142 = vmatpush1.msra.mxu0 %v121
    %143 = vmatprep.subr.mxu0 0.0
    %144 = vmatpush1.msra.mxu0 %v120
    %145 = vmatprep.subr.mxu0 0.0
    %146 = vmatpush1.msra.mxu0 %v119
    %147 = vmatprep.subr.mxu0 0.0
    %148 = vmatpush1.msra.mxu0 %v118
    %149 = vmatprep.subr.mxu0 0.0
    %150 = vmatpush1.msra.mxu0 %v117
    %151 = vmatprep.subr.mxu0 0.0
    %152 = vmatpush1.msra.mxu0 %v116
    %153 = vmatprep.subr.mxu0 0.0
    %154 = vmatpush1.msra.mxu0 %v115
    %155 = vmatprep.subr.mxu0 0.0
    %156 = vmatpush1.msra.mxu0 %v114
    %157 = vmatprep.subr.mxu0 0.0
    %158 = vmatpush1.msra.mxu0 %v113
    %159 = vmatprep.subr.mxu0 0.0
    %160 = vmatpush1.msra.mxu0 %v112
    %161 = vmatprep.subr.mxu0 0.0
    %162 = vmatpush1.msra.mxu0 %v111
    %163 = vmatprep.subr.mxu0 0.0
    %164 = vmatpush1.msra.mxu0 %v110
    %165 = vmatprep.subr.mxu0 0.0
    %166 = vmatpush2.msra.mxu0 0.0
    %167 = vmatprep.subr.mxu0 0.0
    %168 = vmatpush2.msra.mxu0 0.0
    %169 = vmatprep.subr.mxu0 0.0
    %170 = vmatpush2.msra.mxu0 0.0
    %171 = vmatprep.subr.mxu0 0.0
    %172 = vmatpush2.msra.mxu0 0.0
    %173 = vmatprep.subr.mxu0 0.0
    %174 = vmatpush2.msra.mxu0 0.0
    %175 = vmatprep.subr.mxu0 0.0
    %176 = vmatpush2.msra.mxu0 0.0
    %177 = vmatprep.subr.mxu0 0.0
    %178 = vmatpush2.msra.mxu0 0.0
    %179 = vmatprep.subr.mxu0 0.0
    %180 = vmatpush2.msra.mxu0 0.0
    %181 = vmatprep.subr.mxu0 0.0
    %182 = vmatpush2.msra.mxu0 0.0
    %183 = vmatprep.subr.mxu0 0.0
    %184 = vmatpush2.msra.mxu0 0.0
    %185 = vmatprep.subr.mxu0 0.0
    %186 = vmatpush2.msra.mxu0 0.0
    %187 = vmatprep.subr.mxu0 0.0
    %188 = vmatpush2.msra.mxu0 0.0
    %189 = vmatprep.subr.mxu0 0.0
    %190 = vmatpush2.msra.mxu0 0.0
    %191 = vmatprep.subr.mxu0 0.0
    %192 = vmatpush2.msra.mxu0 0.0
    %193 = vmatprep.subr.mxu0 0.0
    %194 = vmatpush2.msra.mxu0 0.0
    %195 = vmatprep.subr.mxu0 0.0
    %196 = vmatpush2.msra.mxu0 0.0
    %197 = vmatprep.mubr.f32.mxu0 0.0
    %198 = vmatmul.mubr.f32.gmra.mxu0 %v109
    %v199 = vpop.f32.mrf.mxu0
    %v200 = vadd.f32 %v131, %v199
    %v201 = vpop.f32.mrf.mxu0
    %202 = vdwg.mxu0
    %vm203 = vcmask 39936
    %204 = vst.msk [vmem:[#allocation2] sm:$0xff] %vm203, %v200
    // Predicated region
    $region22: #{tpu_custom_call.1} parent=1 // pred_check
      _
    $region23: #{tpu_custom_call.1} parent=1 // pred_check_branch
      %206 = sbr.rel (0) target = $region25
    $region24: #{tpu_custom_call.1} parent=1 // pred_region
      %s208 = ssub.s32 128, 128
      %209 = vsyncadd [#allocation3], %s208
      %s211 = sshll.u32 [#allocation2], 4
      %s212 = int_to_ptr.vmem [resolvable:$true] %s211
      %214 = dma.vmem_to_hbm [thread:$0]  %s212, 128, %s5, [#allocation3]
    $region25: #{tpu_custom_call.1} parent=1 // pred_fallthru
      _
    // Predicated region
    $region26: #{tpu_custom_call.1} parent=1 // pred_check
      _
    $region27: #{tpu_custom_call.1} parent=1 // pred_check_branch
      %216 = sbr.rel (0) target = $region29
    $region28: #{tpu_custom_call.1} parent=1 // pred_region
      %217 = dma.done [#allocation3], 128
    $region29: #{tpu_custom_call.1} parent=1 // pred_fallthru
      _
    %218 = vsyncpa [#allocation3], 1

</llo_original>
